<compile_context>
chip_gen: v6e
topology: v6e:2x2x1
jax: 0.10.0
libtpu: 0.0.40
codegen_flags: <defaults>
</compile_context>

<pallas_src>
import functools

import jax
import jax.numpy as jnp
from jax.experimental import pallas as pl
from jax.experimental.pallas import tpu as pltpu


def _round_up(x: int, m: int) -> int:
    return -(-x // m) * m


# --------------------------------------------------------------------------
# Dense path: sample viewed as (n_rows, 128); lane+sublane dense tiles.
# --------------------------------------------------------------------------
def _l1_rows_kernel(n_rows: int, num_chunks: int, cps: int, t_rows: int,
                    acc_rows: int, mask_rows: bool, grid_chunks: int,
                    yp_ref, yt_ref, out_ref):
    """Accumulate sum(|yp - yt|) into a resident (acc_rows, 128) block.

    yp_ref, yt_ref : (t_rows, 128) VMEM tiles (t_rows a multiple of acc_rows)
    out_ref        : (acc_rows, 128) f32 accumulator, resident across chunks
    Grid is (B, n_splits, cps); global chunk index g = s * cps + c.
    """
    s = pl.program_id(1)
    c = pl.program_id(2)
    g = s * cps + c  # global chunk index along the row axis

    @pl.when(c == 0)
    def _():
        out_ref[...] = jnp.zeros_like(out_ref)

    def accumulate(masked):
        diff = jnp.abs(yp_ref[...].astype(jnp.float32)
                       - yt_ref[...].astype(jnp.float32))
        if masked:  # static: only instantiated for the last-chunk branch
            row = (jax.lax.broadcasted_iota(jnp.int32, (t_rows, 128), 0)
                   + g * t_rows)
            diff = jnp.where(row < n_rows, diff, 0.0)
        # (t_rows,128) -> (t_rows//acc_rows, acc_rows, 128) regroups whole
        # (8,128) vreg rows (free); sum(axis=0) is VPU adds into acc_rows//8
        # independent accumulator chains.
        out_ref[...] += jnp.sum(
            diff.reshape(t_rows // acc_rows, acc_rows, 128), axis=0)

    if (grid_chunks == num_chunks) and (not mask_rows):
        # No ragged tail and no split overhang: every step is a plain add.
        accumulate(False)
    else:
        last = num_chunks - 1

        @pl.when(g < last)          # interior chunks: unmasked, no iota/select
        def _():
            accumulate(False)

        @pl.when(g == last)         # last chunk: masked only if tail exists
        def _():
            accumulate(mask_rows)
        # g > last (split overhang): skip entirely.


def _per_sample_l1_sums_dense(yp, yt, n_valid: int, *, max_tile_rows=None):
    B = yp.shape[0]
    itemsize = jnp.dtype(yp.dtype).itemsize
    n_rows = n_valid // 128

    # Minimum sublane tile for the input dtype (8 for f32, 16 for bf16, ...).
    min_rows = max(8, 32 // itemsize)
    acc_rows = 64 if n_rows >= 64 else min_rows

    # ~4 MiB of f32 working set per input tile (8192 rows): 2 inputs x 2
    # pipeline buffers plus in-kernel f32 temporaries stay well under the
    # 48 MiB scoped limit (and v7x's 64 MiB physical VMEM).
    t_cap = max(acc_rows, ((4 << 20) // (128 * 4)) // acc_rows * acc_rows)
    if max_tile_rows is not None:                   # test hook only
        t_cap = max(acc_rows, (max_tile_rows // acc_rows) * acc_rows)
    t_rows = max(acc_rows, min(t_cap, (n_rows // acc_rows) * acc_rows))
    num_chunks = pl.cdiv(n_rows, t_rows)
    mask_rows = (n_rows % t_rows) != 0

    # v7x has 2 TensorCores: if B alone cannot keep both busy, split each
    # sample's chunk range across a second "parallel" axis. Harmless on
    # single-TC v5e/v6e.
    n_splits = 2 if (B == 1 and num_chunks >= 2) else 1
    cps = pl.cdiv(num_chunks, n_splits)
    grid_chunks = n_splits * cps

    yp3 = yp.reshape(B, n_rows, 128)   # contiguous reshape: no HBM copy
    yt3 = yt.reshape(B, n_rows, 128)

    if grid_chunks == num_chunks:
        in_map = lambda b, s, c: (b, s * cps + c, 0)
    else:
        last = num_chunks - 1
        # Clamp overhang steps to the last valid block (their accumulation is
        # skipped in-kernel) so no out-of-range block is ever fetched.
        in_map = lambda b, s, c: (b, jnp.minimum(s * cps + c, last), 0)

    cost = pl.CostEstimate(
        flops=3 * B * n_valid,
        transcendentals=0,
        bytes_accessed=2 * B * n_valid * itemsize
        + B * n_splits * acc_rows * 128 * 4,
    )

    partials = pl.pallas_call(
        functools.partial(_l1_rows_kernel, n_rows, num_chunks, cps, t_rows,
                          acc_rows, mask_rows, grid_chunks),
        out_shape=jax.ShapeDtypeStruct((B, n_splits, acc_rows, 128),
                                       jnp.float32),
        grid_spec=pltpu.PrefetchScalarGridSpec(
            num_scalar_prefetch=0,
            grid=(B, n_splits, cps),
            in_specs=[
                pl.BlockSpec((None, t_rows, 128), in_map),
                pl.BlockSpec((None, t_rows, 128), in_map),
            ],
            # Same block for every chunk c -> resident accumulator per (b, s).
            out_specs=pl.BlockSpec((None, None, acc_rows, 128),
                                   lambda b, s, c: (b, s, 0, 0)),
        ),
        compiler_params=pltpu.CompilerParams(
            dimension_semantics=("parallel", "parallel", "arbitrary"),
            vmem_limit_bytes=48 << 20,
        ),
        cost_estimate=cost,
    )(yp3, yt3)

    # Tiny epilogue: fold splits + the (acc_rows,128) partials. (B,) per-sample
    # sums. Kept outside the kernel (negligible vs. the streaming time).
    return jnp.sum(partials, axis=(1, 2, 3))


# --------------------------------------------------------------------------
# Fallback: flattened size not a multiple of 128, or too few rows. Un-padded,
# last-chunk-only lane masking, resident (B,128) accumulator (VPU adds per
# 128-lane tile), single cross-lane reduce outside the kernel.
# --------------------------------------------------------------------------
def _l1_flat_kernel(n_valid: int, tn: int, num_chunks: int, mask_last: bool,
                    yp_ref, yt_ref, out_ref):
    """yp_ref, yt_ref: (B, tn) tiles; out_ref: (B, 128) resident accumulator."""
    j = pl.program_id(0)
    n_tiles = tn // 128
    rem = tn % 128   # nonzero only when tn == n_valid < 128 (single chunk)

    @pl.when(j == 0)
    def _():
        out_ref[...] = jnp.zeros_like(out_ref)

    def accumulate(masked):
        if n_tiles > 0:
            acc = out_ref[...]
            for k in range(n_tiles):   # static 128-lane-aligned ref slices
                a = yp_ref[:, k * 128:(k + 1) * 128].astype(jnp.float32)
                b = yt_ref[:, k * 128:(k + 1) * 128].astype(jnp.float32)
                part = jnp.abs(a - b)
                if masked:
                    col = (jax.lax.broadcasted_iota(jnp.int32, part.shape, 1)
                           + j * tn + k * 128)
                    part = jnp.where(col < n_valid, part, 0.0)
                acc = acc + part       # pure VPU add, same lanes, no XLU
            out_ref[...] = acc
        if rem:
            # Only for n_valid < 128 (single chunk, no masking needed).
            a = yp_ref[:, n_tiles * 128:].astype(jnp.float32)
            b = yt_ref[:, n_tiles * 128:].astype(jnp.float32)
            out_ref[:, :rem] += jnp.abs(a - b)

    if not mask_last:
        accumulate(False)
    else:
        last = num_chunks - 1

        @pl.when(j < last)
        def _():
            accumulate(False)

        @pl.when(j == last)
        def _():
            accumulate(True)


def _per_sample_l1_sums_flat(yp, yt, n_valid: int):
    B = yp.shape[0]
    itemsize = jnp.dtype(yp.dtype).itemsize

    # VMEM budget must account for sublane padding: a (B, tn) block with B < 8
    # occupies round_up(B, 8) sublane rows in VMEM. Also cap the unrolled
    # in-kernel lane-tile loop at 64 tiles.
    b_pad = _round_up(B, 8)
    budget_lanes = max(128, ((1 << 20) // (b_pad * itemsize)) // 128 * 128)
    cap = min(budget_lanes, 64 * 128)
    if n_valid >= 128:
        tn = min(cap, (n_valid // 128) * 128)
    else:
        tn = n_valid                      # full array, single chunk
    num_chunks = pl.cdiv(n_valid, tn)
    mask_last = (n_valid % tn) != 0

    cost = pl.CostEstimate(
        flops=3 * B * n_valid,
        transcendentals=0,
        bytes_accessed=2 * B * n_valid * itemsize + B * 128 * 4,
    )

    partial = pl.pallas_call(
        functools.partial(_l1_flat_kernel, n_valid, tn, num_chunks, mask_last),
        out_shape=jax.ShapeDtypeStruct((B, 128), jnp.float32),
        grid_spec=pltpu.PrefetchScalarGridSpec(
            num_scalar_prefetch=0,
            grid=(num_chunks,),
            in_specs=[
                pl.BlockSpec((B, tn), lambda j: (0, j)),
                pl.BlockSpec((B, tn), lambda j: (0, j)),
            ],
            out_specs=pl.BlockSpec((B, 128), lambda j: (0, 0)),
        ),
        compiler_params=pltpu.CompilerParams(
            dimension_semantics=("arbitrary",),
            vmem_limit_bytes=32 << 20,
        ),
        cost_estimate=cost,
    )(yp, yt)

    # Single cross-lane reduce, once, outside the hot loop.
    return jnp.sum(partial, axis=1)   # (B,) per-sample sums


# --------------------------------------------------------------------------
# Public wrapper: matches ReconstructionLoss.forward(x, y_pred, y_true, psf)
# --------------------------------------------------------------------------
def reconstruction_loss(x, y_pred, y_true, psf, *, _max_tile_rows=None):
    """Per-sample L1 reconstruction loss. Returns shape (B,) float32.

    x and psf are ignored (matching the PyTorch module). Differences are
    computed / accumulated in f32 regardless of the input dtype."""
    del x, psf
    assert y_pred.shape == y_true.shape and y_pred.ndim == 4
    B = y_pred.shape[0]
    n_valid = int(y_pred.shape[1] * y_pred.shape[2] * y_pred.shape[3])

    yp = y_pred.reshape(B, n_valid)
    yt = y_true.reshape(B, n_valid)

    itemsize = jnp.dtype(y_pred.dtype).itemsize
    min_rows = max(8, 32 // itemsize)
    if n_valid % 128 == 0 and (n_valid // 128) >= min_rows:
        sums = _per_sample_l1_sums_dense(yp, yt, n_valid,
                                         max_tile_rows=_max_tile_rows)
    else:
        # Non-128-aligned / tiny samples take the flat fallback. For very large
        # ragged samples the rows-layout prefix + tail restructure would be
        # better still; left as a fallback-path refinement.
        sums = _per_sample_l1_sums_flat(yp, yt, n_valid)

    return sums / jnp.float32(n_valid)


if __name__ == "__main__":
    key = jax.random.PRNGKey(0)
    kx, kp, kt, kpsf = jax.random.split(key, 4)

    def ref_loss(yp, yt):
        b = yp.shape[0]
        d = jnp.abs(yp.astype(jnp.float32) - yt.astype(jnp.float32))
        return jnp.mean(d.reshape(b, -1), axis=1)

    # 1) Main lane-aligned dense path (C*H*W = 1024 = 8*128, single chunk).
    B, C, H, W = 2, 4, 16, 16
    x = jax.random.normal(kx, (B, C, H, W), dtype=jnp.float32)       # unused
    y_pred = jax.random.normal(kp, (B, C, H, W), dtype=jnp.float32)
    y_true = jax.random.normal(kt, (B, C, H, W), dtype=jnp.float32)
    psf = jax.random.normal(kpsf, (B, 1, 5, 5), dtype=jnp.float32)   # unused
    out = jax.block_until_ready(reconstruction_loss(x, y_pred, y_true, psf))
    assert out.shape == (B,)
    assert jnp.allclose(out, ref_loss(y_pred, y_true), rtol=1e-5, atol=1e-6)

    # 2) Ragged fallback path (C*H*W = 300, not a multiple of 128).
    yp2 = jax.random.normal(kp, (B, 3, 10, 10), dtype=jnp.float32)
    yt2 = jax.random.normal(kt, (B, 3, 10, 10), dtype=jnp.float32)
    x2 = jnp.zeros_like(yp2)
    out2 = jax.block_until_ready(reconstruction_loss(x2, yp2, yt2, psf))
    assert jnp.allclose(out2, ref_loss(yp2, yt2), rtol=1e-5, atol=1e-6)

    # 3) Multi-chunk dense path, no split (n_rows = 24, forced t_rows = 8).
    yp3 = jax.random.normal(kp, (2, 3, 32, 32), dtype=jnp.float32)
    yt3 = jax.random.normal(kt, (2, 3, 32, 32), dtype=jnp.float32)
    x3 = jnp.zeros_like(yp3)
    out3 = jax.block_until_ready(
        reconstruction_loss(x3, yp3, yt3, psf, _max_tile_rows=8))
    assert jnp.allclose(out3, ref_loss(yp3, yt3), rtol=1e-5, atol=1e-6)

    # 4) B=1: chunk axis split across 2 cores + masked last chunk + one
    #    skipped overhang step (n_rows = 40, t_rows = 16 -> 3 chunks, 2 splits).
    yp4 = jax.random.normal(kp, (1, 4, 32, 40), dtype=jnp.float32)
    yt4 = jax.random.normal(kt, (1, 4, 32, 40), dtype=jnp.float32)
    x4 = jnp.zeros_like(yp4)
    psf4 = jnp.zeros((1, 1, 5, 5), dtype=jnp.float32)
    out4 = jax.block_until_ready(
        reconstruction_loss(x4, yp4, yt4, psf4, _max_tile_rows=16))
    assert jnp.allclose(out4, ref_loss(yp4, yt4), rtol=1e-5, atol=1e-6)

    # 5) bf16 inputs go straight through the dense path (f32 accumulation).
    yp5 = jax.random.normal(kp, (2, 4, 32, 16), jnp.float32).astype(jnp.bfloat16)
    yt5 = jax.random.normal(kt, (2, 4, 32, 16), jnp.float32).astype(jnp.bfloat16)
    x5 = jnp.zeros_like(yp5)
    out5 = jax.block_until_ready(reconstruction_loss(x5, yp5, yt5, psf))
    assert jnp.allclose(out5, ref_loss(yp5, yt5), rtol=1e-4, atol=1e-5)

    print("KERNEL_OK")
</pallas_src>

<mosaic_0001>
module attributes {stable_mosaic.version = 11 : i64} {
  func.func @_l1_rows_kernel(%arg0: i32, %arg1: i32, %arg2: i32, %arg3: memref<1x8x128xf32, #tpu.memory_space<vmem>>, %arg4: memref<1x8x128xf32, #tpu.memory_space<vmem>>, %arg5: memref<1x1x8x128xf32, #tpu.memory_space<vmem>>) attributes {dimension_semantics = [#tpu.dimension_semantics<parallel>, #tpu.dimension_semantics<parallel>, #tpu.dimension_semantics<arbitrary>], iteration_bounds = array<i64: 2, 1, 1>, scalar_prefetch = 0 : i64, scratch_operands = 0 : i64, tpu.core_type = #tpu.core_type<tc>, window_params = [{transform_indices = @transform_0, window_bounds = array<i64: 1, 8, 128>}, {transform_indices = @transform_1, window_bounds = array<i64: 1, 8, 128>}, {transform_indices = @transform_2, window_bounds = array<i64: 1, 1, 8, 128>}]} {
    %c0_i32 = arith.constant 0 : i32
    %0 = arith.cmpi eq, %arg2, %c0_i32 : i32
    %1 = arith.extui %0 : i1 to i32
    %c0_i32_0 = arith.constant 0 : i32
    %2 = arith.cmpi ne, %1, %c0_i32_0 : i32
    scf.if %2 {
      %cst_14 = arith.constant 0.000000e+00 : f32
      %17 = vector.broadcast %cst_14 : f32 to vector<8x128xf32>
      %c0_15 = arith.constant 0 : index
      %c0_16 = arith.constant 0 : index
      %c0_17 = arith.constant 0 : index
      %c0_18 = arith.constant 0 : index
      %18 = vector.load %arg5[%c0_15, %c0_16, %c0_17, %c0_18] : memref<1x1x8x128xf32, #tpu.memory_space<vmem>>, vector<1x1x8x128xf32>
      %19 = vector.shape_cast %18 : vector<1x1x8x128xf32> to vector<8x128xf32>
      %20 = vector.shape_cast %17 : vector<8x128xf32> to vector<1x1x8x128xf32>
      tpu.vector_store %arg5[%c0_15, %c0_16, %c0_17, %c0_18], %20 {strides = array<i32>} : memref<1x1x8x128xf32, #tpu.memory_space<vmem>>, vector<1x1x8x128xf32>,
    } else {
    }
    %c0 = arith.constant 0 : index
    %c0_1 = arith.constant 0 : index
    %c0_2 = arith.constant 0 : index
    %3 = vector.load %arg3[%c0, %c0_1, %c0_2] : memref<1x8x128xf32, #tpu.memory_space<vmem>>, vector<1x8x128xf32>
    %4 = vector.shape_cast %3 : vector<1x8x128xf32> to vector<8x128xf32>
    %c0_3 = arith.constant 0 : index
    %c0_4 = arith.constant 0 : index
    %c0_5 = arith.constant 0 : index
    %5 = vector.load %arg4[%c0_3, %c0_4, %c0_5] : memref<1x8x128xf32, #tpu.memory_space<vmem>>, vector<1x8x128xf32>
    %6 = vector.shape_cast %5 : vector<1x8x128xf32> to vector<8x128xf32>
    %7 = arith.subf %4, %6 : vector<8x128xf32>
    %8 = math.absf %7 : vector<8x128xf32>
    %c0_6 = arith.constant 0 : index
    %c0_7 = arith.constant 0 : index
    %c0_8 = arith.constant 0 : index
    %c0_9 = arith.constant 0 : index
    %9 = vector.load %arg5[%c0_6, %c0_7, %c0_8, %c0_9] : memref<1x1x8x128xf32, #tpu.memory_space<vmem>>, vector<1x1x8x128xf32>
    %10 = vector.shape_cast %9 : vector<1x1x8x128xf32> to vector<8x128xf32>
    %11 = vector.shape_cast %8 : vector<8x128xf32> to vector<1x8x128xf32>
    %cst = arith.constant dense<0.000000e+00> : vector<8x128xf32>
    %12 = vector.multi_reduction <add>, %11, %cst [0] : vector<1x8x128xf32> to vector<8x128xf32>
    %13 = arith.addf %10, %12 : vector<8x128xf32>
    %c0_10 = arith.constant 0 : index
    %c0_11 = arith.constant 0 : index
    %c0_12 = arith.constant 0 : index
    %c0_13 = arith.constant 0 : index
    %14 = vector.load %arg5[%c0_10, %c0_11, %c0_12, %c0_13] : memref<1x1x8x128xf32, #tpu.memory_space<vmem>>, vector<1x1x8x128xf32>
    %15 = vector.shape_cast %14 : vector<1x1x8x128xf32> to vector<8x128xf32>
    %16 = vector.shape_cast %13 : vector<8x128xf32> to vector<1x1x8x128xf32>
    tpu.vector_store %arg5[%c0_10, %c0_11, %c0_12, %c0_13], %16 {strides = array<i32>} : memref<1x1x8x128xf32, #tpu.memory_space<vmem>>, vector<1x1x8x128xf32>,
    return
  }
  func.func @transform_0(%arg0: i32, %arg1: i32, %arg2: i32) -> (i32, i32, i32) {
    %c1_i32 = arith.constant 1 : i32
    %0 = arith.muli %arg1, %c1_i32 : i32
    %1 = arith.addi %0, %arg2 : i32
    %c0_i32 = arith.constant 0 : i32
    %c0_i32_0 = arith.constant 0 : i32
    return %arg0, %1, %c0_i32 : i32, i32, i32
  }
  func.func @transform_1(%arg0: i32, %arg1: i32, %arg2: i32) -> (i32, i32, i32) {
    %c1_i32 = arith.constant 1 : i32
    %0 = arith.muli %arg1, %c1_i32 : i32
    %1 = arith.addi %0, %arg2 : i32
    %c0_i32 = arith.constant 0 : i32
    %c0_i32_0 = arith.constant 0 : i32
    return %arg0, %1, %c0_i32 : i32, i32, i32
  }
  func.func @transform_2(%arg0: i32, %arg1: i32, %arg2: i32) -> (i32, i32, i32, i32) {
    %c0_i32 = arith.constant 0 : i32
    %c0_i32_0 = arith.constant 0 : i32
    %c0_i32_1 = arith.constant 0 : i32
    return %arg0, %arg1, %c0_i32, %c0_i32_0 : i32, i32, i32, i32
  }
}

</mosaic_0001>

<llo_original>
// kernel: tpu_custom_call.1
$region0: #{tpu_custom_call.1}
  #allocation0 [shape = 'u32[]', space=smem, size = 0x4, offset = 0x4, fixed_abs, tag = 'smem constant byte address 0x4 - core index']
  #allocation1 [shape = 'u32[144,128]{1,0:T(1,128)}', space=vmem, size = 0x12000, scoped, tag = 'internal scratch']
  %s0 = inlined_call_operand.hbm [shape: f32[2,8,128], index: 0, kind: input, shape index: {}]
  %s1 = inlined_call_operand.hbm [shape: f32[2,8,128], index: 1, kind: input, shape index: {}]
  %s2 = inlined_call_operand.hbm [shape: f32[2,1,8,128], index: 2, kind: output, shape index: {}]
  %s3 = sld [smem:[#allocation0]]
  $region53: #{tpu_custom_call.1} parent=0
    _
  %s5 = ssub.s32 1, %s3
  %s6 = scalar_select 0, %s5, %s3
  $region1: #{tpu_custom_call.1} parent=0
    #allocation2 [shape = 'u8[8192]{0}', space=vmem, size = 0x2000, scoped, tag = 'input window, operand 0']
    #allocation3 [shape = 's32[2]{0}', space=sflag, size = 0x8, scoped, tag = 'scoped memory for tpu_custom_call.1']
    #allocation4 [shape = 's32[2]{0}', space=sflag, size = 0x8, scoped, tag = 'scoped memory for tpu_custom_call.1']
    #allocation5 [shape = 'u8[8192]{0}', space=vmem, size = 0x2000, scoped, tag = 'input window, operand 1']
    #allocation6 [shape = 's32[2]{0}', space=sflag, size = 0x8, scoped, tag = 'scoped memory for tpu_custom_call.1']
    #allocation7 [shape = 'u8[8192]{0}', space=vmem, size = 0x2000, scoped, tag = 'output window, operand 0']
    %7 = vsyncpa [#allocation3], 0
    %s8 = scalar_lea.sflag [#allocation3], 1
    %9 = vsyncpa %s8, 0
    %10 = vsyncpa [#allocation6], 0
    %s11 = scalar_lea.sflag [#allocation6], 1
    %12 = vsyncpa %s11, 0
    %13 = vsyncpa [#allocation4], 0
    %s14 = scalar_lea.sflag [#allocation4], 1
    %15 = vsyncpa %s14, 0
    loop: start=0, step=1, limit=4
    $region2: #{tpu_custom_call.1} parent=1 // loop_pre_header
      _
    $region3: #{tpu_custom_call.1} parent=1 // loop_header
      %s17 = sphi 0, %s21
      %p18 = scmp.ge.s32.totalorder %s17, 4
      %s24 = sphi 0, %s43
      %s25 = sphi 0, %s39
      %s26 = sphi 0, %s35
      %s27 = sphi 0, %s24
      %s28 = sphi 0, %s25
      %s29 = sphi 0, %s26
      %s30 = sphi 0, %s27
      %s31 = sphi 0, %s28
      %s32 = sphi 0, %s29
      %s50 = sphi 0, %s52
      %s53 = sphi 0, %s50
      %s54 = sphi 0, %s53
      %s70 = sphi 0, %s54
      %s80 = sphi 0, %s82
      %s83 = sphi 0, %s80
      %s84 = sphi 0, %s83
      %s100 = sphi 0, %s84
      %s108 = sphi 0, %s110
      %s111 = sphi 0, %s108
      %s112 = sphi 0, %s111
      %s128 = sphi 0, %s112
    $region4: #{tpu_custom_call.1} parent=1 // loop_header_branch
      %20 = sbr.rel (%p18) target = $region8
    $region5: #{tpu_custom_call.1} parent=1 // loop_body
      %s22 = ssub.s32 %s17, 1
      %s23 = ssub.s32 %s17, 2
      %s33 = sadd.s32 1, %s26
      %p34 = scmp.ge.s32.totalorder %s33, 1
      %s35 = scalar_select %p34, 0, %s33
      %s36 = sadd.s32 1, %s25
      %s37 = scalar_select %p34, %s36, %s25
      %p38 = scmp.ge.s32.totalorder %s37, 1
      %s39 = scalar_select %p38, 0, %s37
      %s40 = sadd.s32 1, %s24
      %s41 = scalar_select %p38, %s40, %s24
      %p42 = scmp.ge.s32.totalorder %s41, 2
      %s43 = scalar_select %p42, 0, %s41
      %s44 = sadd.s32 %s25, %s26
      %s45 = sadd.s32 %s39, %s35
      %s46 = ssub.s32 %s24, %s43
      %s47 = ssub.s32 %s44, %s45
      %s48 = sor.u32 %s46, %s47
      %p49 = scmp.eq.s32.totalorder %s48, 0
      %s51 = sadd.s32 %s50, 1
      %s52 = scalar_select %p49, %s50, %s51
      %p55 = pneg %p49
      %p56 = scmp.eq.s32.totalorder %s17, 1
      %p57 = por %p55, %p56
      %p58 = scmp.ne.s32.totalorder %s50, %s53
      %p59 = scmp.eq.s32.totalorder %s17, 0
      %p60 = por %p58, %p59
      %p61 = scmp.ne.s32.totalorder %s50, %s53
      %p62 = scmp.eq.s32.totalorder %s22, 1
      %p63 = por %p61, %p62
      %p64 = scmp.ne.s32.totalorder %s53, %s54
      %p65 = scmp.eq.s32.totalorder %s22, 0
      %p66 = por %p64, %p65
      %p67 = scmp.ne.s32.totalorder %s53, %s54
      %p68 = scmp.eq.s32.totalorder %s23, 1
      %p69 = por %p67, %p68
      %p71 = scmp.ne.s32.totalorder %s54, %s70
      %p72 = scmp.eq.s32.totalorder %s23, 0
      %p73 = por %p71, %p72
      %s74 = sadd.s32 %s25, %s26
      %s75 = sadd.s32 %s39, %s35
      %s76 = ssub.s32 %s24, %s43
      %s77 = ssub.s32 %s74, %s75
      %s78 = sor.u32 %s76, %s77
      %p79 = scmp.eq.s32.totalorder %s78, 0
      %s81 = sadd.s32 %s80, 1
      %s82 = scalar_select %p79, %s80, %s81
      %p85 = pneg %p79
      %p86 = scmp.eq.s32.totalorder %s17, 1
      %p87 = por %p85, %p86
      %p88 = scmp.ne.s32.totalorder %s80, %s83
      %p89 = scmp.eq.s32.totalorder %s17, 0
      %p90 = por %p88, %p89
      %p91 = scmp.ne.s32.totalorder %s80, %s83
      %p92 = scmp.eq.s32.totalorder %s22, 1
      %p93 = por %p91, %p92
      %p94 = scmp.ne.s32.totalorder %s83, %s84
      %p95 = scmp.eq.s32.totalorder %s22, 0
      %p96 = por %p94, %p95
      %p97 = scmp.ne.s32.totalorder %s83, %s84
      %p98 = scmp.eq.s32.totalorder %s23, 1
      %p99 = por %p97, %p98
      %p101 = scmp.ne.s32.totalorder %s84, %s100
      %p102 = scmp.eq.s32.totalorder %s23, 0
      %p103 = por %p101, %p102
      %s104 = ssub.s32 %s24, %s43
      %s105 = ssub.s32 %s25, %s39
      %s106 = sor.u32 %s104, %s105
      %p107 = scmp.eq.s32.totalorder %s106, 0
      %s109 = sadd.s32 %s108, 1
      %s110 = scalar_select %p107, %s108, %s109
      %p113 = pneg %p107
      %p114 = scmp.eq.s32.totalorder %s17, 1
      %p115 = por %p113, %p114
      %p116 = scmp.ne.s32.totalorder %s108, %s111
      %p117 = scmp.eq.s32.totalorder %s17, 0
      %p118 = por %p116, %p117
      %p119 = scmp.ne.s32.totalorder %s108, %s111
      %p120 = scmp.eq.s32.totalorder %s22, 1
      %p121 = por %p119, %p120
      %p122 = scmp.ne.s32.totalorder %s111, %s112
      %p123 = scmp.eq.s32.totalorder %s22, 0
      %p124 = por %p122, %p123
      %p125 = scmp.ne.s32.totalorder %s111, %s112
      %p126 = scmp.eq.s32.totalorder %s23, 1
      %p127 = por %p125, %p126
      %p129 = scmp.ne.s32.totalorder %s112, %s128
      %p130 = scmp.eq.s32.totalorder %s23, 0
      %p131 = por %p129, %p130
      %p132 = scmp.le.s32.totalorder 1, %s17
      %p133 = scmp.lt.s32.totalorder %s17, 3
      %p134 = pnand %p132, %p133
      %p135 = pneg %p134
      // Predicated region
      $region9: #{tpu_custom_call.1} parent=5 // pred_check
        _
      $region10: #{tpu_custom_call.1} parent=5 // pred_check_branch
        %137 = sbr.rel (%p134) target = $region12
      $region11: #{tpu_custom_call.1} parent=5 // pred_region
        %s138 = ssub.s32 %s17, 1
      $region12: #{tpu_custom_call.1} parent=5 // pred_fallthru
        _
      %p139 = scmp.lt.s32.totalorder %s17, 2
      // Predicated region
      $region13: #{tpu_custom_call.1} parent=5 // pred_check
        %p140 = pneg %p139
      $region14: #{tpu_custom_call.1} parent=5 // pred_check_branch
        %142 = sbr.rel (%p140) target = $region16
      $region15: #{tpu_custom_call.1} parent=5 // pred_region
        // Predicated region
        $region17: #{tpu_custom_call.1} parent=15 // pred_check
          %p143 = pneg %p60
        $region18: #{tpu_custom_call.1} parent=15 // pred_check_branch
          %145 = sbr.rel (%p143) target = $region20
        $region19: #{tpu_custom_call.1} parent=15 // pred_region
          %s146 = sand.u32 %s50, 1
          %s147 = scalar_lea.sflag [#allocation3], %s146
          %s148 = sand.u32 %s50, 1
          %s149 = smul.addr %s148, 8
          %s150 = scalar_lea.vmem [#allocation2], %s149
          %s151 = sadd.s32 %s25, %s26
          %s153 = ssub.s32 128, 128
          %154 = vsyncadd %s147, %s153
          %s155 = sadd.s32 %s151, %s24
          %s156 = smul.addr %s155, 128
          %s157 = scalar_lea.hbm %s0, %s156
          %s159 = sshll.u32 %s150, 4
          %s160 = int_to_ptr.vmem [resolvable:$true] %s159
          %162 = dma.hbm_to_vmem [thread:$0]  %s157, 128, %s160, %s147
        $region20: #{tpu_custom_call.1} parent=15 // pred_fallthru
          _
        // Predicated region
        $region21: #{tpu_custom_call.1} parent=15 // pred_check
          %p163 = pneg %p90
        $region22: #{tpu_custom_call.1} parent=15 // pred_check_branch
          %165 = sbr.rel (%p163) target = $region24
        $region23: #{tpu_custom_call.1} parent=15 // pred_region
          %s166 = sand.u32 %s80, 1
          %s167 = scalar_lea.sflag [#allocation6], %s166
          %s168 = sand.u32 %s80, 1
          %s169 = smul.addr %s168, 8
          %s170 = scalar_lea.vmem [#allocation5], %s169
          %s171 = sadd.s32 %s25, %s26
          %s173 = ssub.s32 128, 128
          %174 = vsyncadd %s167, %s173
          %s175 = sadd.s32 %s171, %s24
          %s176 = smul.addr %s175, 128
          %s177 = scalar_lea.hbm %s1, %s176
          %s179 = sshll.u32 %s170, 4
          %s180 = int_to_ptr.vmem [resolvable:$true] %s179
          %182 = dma.hbm_to_vmem [thread:$0]  %s177, 128, %s180, %s167
        $region24: #{tpu_custom_call.1} parent=15 // pred_fallthru
          _
      $region16: #{tpu_custom_call.1} parent=5 // pred_fallthru
        _
      %p183 = scmp.le.s32.totalorder 1, %s17
      %p184 = scmp.lt.s32.totalorder %s17, 3
      %p185 = pnand %p183, %p184
      %p186 = pneg %p185
      // Predicated region
      $region25: #{tpu_custom_call.1} parent=5 // pred_check
        _
      $region26: #{tpu_custom_call.1} parent=5 // pred_check_branch
        %188 = sbr.rel (%p185) target = $region28
      $region27: #{tpu_custom_call.1} parent=5 // pred_region
        %s189 = ssub.s32 %s17, 1
        %s190 = sand.u32 %s53, 1
        %s191 = scalar_lea.sflag [#allocation3], %s190
        %s192 = sand.u32 %s53, 1
        %s193 = smul.addr %s192, 8
        %s194 = scalar_lea.vmem [#allocation2], %s193
        // Predicated region
        $region29: #{tpu_custom_call.1} parent=27 // pred_check
          %p195 = pneg %p66
        $region30: #{tpu_custom_call.1} parent=27 // pred_check_branch
          %197 = sbr.rel (%p195) target = $region32
        $region31: #{tpu_custom_call.1} parent=27 // pred_region
          %198 = dma.done %s191, 128
        $region32: #{tpu_custom_call.1} parent=27 // pred_fallthru
          _
        %s199 = sand.u32 %s83, 1
        %s200 = scalar_lea.sflag [#allocation6], %s199
        %s201 = sand.u32 %s83, 1
        %s202 = smul.addr %s201, 8
        %s203 = scalar_lea.vmem [#allocation5], %s202
        // Predicated region
        $region33: #{tpu_custom_call.1} parent=27 // pred_check
          %p204 = pneg %p96
        $region34: #{tpu_custom_call.1} parent=27 // pred_check_branch
          %206 = sbr.rel (%p204) target = $region36
        $region35: #{tpu_custom_call.1} parent=27 // pred_region
          %207 = dma.done %s200, 128
        $region36: #{tpu_custom_call.1} parent=27 // pred_fallthru
          _
        %s208 = sand.u32 %s53, 1
        %s209 = scalar_lea.sflag [#allocation3], %s208
        %s210 = sand.u32 %s53, 1
        %s211 = smul.addr %s210, 8
        %s212 = scalar_lea.vmem [#allocation2], %s211
        %p213 = pneg %p66
        %p214 = pneg %p63
        %s215 = sand.u32 %s83, 1
        %s216 = scalar_lea.sflag [#allocation6], %s215
        %s217 = sand.u32 %s83, 1
        %s218 = smul.addr %s217, 8
        %s219 = scalar_lea.vmem [#allocation5], %s218
        %p220 = pneg %p96
        %p221 = pneg %p93
        %p222 = pneg %p124
        %p223 = pneg %p121
        %s224 = sand.u32 %s111, 1
        %s225 = scalar_lea.sflag [#allocation4], %s224
        %s226 = sand.u32 %s111, 1
        %s227 = smul.addr %s226, 8
        %s228 = scalar_lea.vmem [#allocation7], %s227
        %s229 = sadd.s32 %s28, %s29
        %s230 = sadd.s32 %s28, %s29
        %p231 = scmp.eq.s32.totalorder %s29, 0
        // Predicated region
        $region37: #{tpu_custom_call.1} parent=27 // pred_check
          %p232 = pneg %p231
        $region38: #{tpu_custom_call.1} parent=27 // pred_check_branch
          %234 = sbr.rel (%p232) target = $region40
        $region39: #{tpu_custom_call.1} parent=27 // pred_region
          %235 = vst [vmem:[%s228] sm:$0xff] 0.0
        $region40: #{tpu_custom_call.1} parent=27 // pred_fallthru
          _
        %v236 = vld [vmem:[%s194] sm:$0xff]
        %v237 = vld [vmem:[%s203] sm:$0xff]
        %v238 = vsub.f32 %v236, %v237
        %v239 = vand.u32 2147483647, %v238
        %v240 = vld [vmem:[%s228] sm:$0xff]
        %v241 = vadd.f32 %v239, 0.0
        %v242 = vadd.f32 %v240, %v241
        %243 = vst [vmem:[%s228] sm:$0xff] %v242
        %s244 = sand.u32 %s111, 1
        %s245 = scalar_lea.sflag [#allocation4], %s244
        %s246 = sand.u32 %s111, 1
        %s247 = smul.addr %s246, 8
        %s248 = scalar_lea.vmem [#allocation7], %s247
        // Predicated region
        $region41: #{tpu_custom_call.1} parent=27 // pred_check
          %p249 = pneg %p121
        $region42: #{tpu_custom_call.1} parent=27 // pred_check_branch
          %251 = sbr.rel (%p249) target = $region44
        $region43: #{tpu_custom_call.1} parent=27 // pred_region
          %s253 = ssub.s32 128, 128
          %254 = vsyncadd %s245, %s253
          %s255 = sadd.s32 %s28, %s27
          %s256 = smul.addr %s255, 128
          %s257 = scalar_lea.hbm %s2, %s256
          %s259 = sshll.u32 %s248, 4
          %s260 = int_to_ptr.vmem [resolvable:$true] %s259
          %262 = dma.vmem_to_hbm [thread:$0]  %s260, 128, %s257, %s245
        $region44: #{tpu_custom_call.1} parent=27 // pred_fallthru
          _
      $region28: #{tpu_custom_call.1} parent=5 // pred_fallthru
        _
      %p263 = scmp.le.s32.totalorder 2, %s17
      // Predicated region
      $region45: #{tpu_custom_call.1} parent=5 // pred_check
        %p264 = pneg %p263
      $region46: #{tpu_custom_call.1} parent=5 // pred_check_branch
        %266 = sbr.rel (%p264) target = $region48
      $region47: #{tpu_custom_call.1} parent=5 // pred_region
        %s267 = ssub.s32 %s17, 2
        // Predicated region
        $region49: #{tpu_custom_call.1} parent=47 // pred_check
          %p268 = pneg %p127
        $region50: #{tpu_custom_call.1} parent=47 // pred_check_branch
          %270 = sbr.rel (%p268) target = $region52
        $region51: #{tpu_custom_call.1} parent=47 // pred_region
          %s271 = sand.u32 %s112, 1
          %s272 = scalar_lea.sflag [#allocation4], %s271
          %s273 = sand.u32 %s112, 1
          %s274 = smul.addr %s273, 8
          %s275 = scalar_lea.vmem [#allocation7], %s274
          %276 = dma.done %s272, 128
        $region52: #{tpu_custom_call.1} parent=47 // pred_fallthru
          _
      $region48: #{tpu_custom_call.1} parent=5 // pred_fallthru
        _
    $region6: #{tpu_custom_call.1} parent=1 // loop_footer
      %s21 = sadd.s32 1, %s17
    $region7: #{tpu_custom_call.1} parent=1 // loop_footer_branch
      %16 = sbr.rel target = $region3
    $region8: #{tpu_custom_call.1} parent=1 // loop_exit
      _
    %277 = vsyncpa [#allocation3], 1
    %s278 = scalar_lea.sflag [#allocation3], 1
    %279 = vsyncpa %s278, 1
    %280 = vsyncpa [#allocation6], 1
    %s281 = scalar_lea.sflag [#allocation6], 1
    %282 = vsyncpa %s281, 1
    %283 = vsyncpa [#allocation4], 1
    %s284 = scalar_lea.sflag [#allocation4], 1
    %285 = vsyncpa %s284, 1

</llo_original>
